<compile_context>
chip_gen: v7x
topology: tpu7x:2x2x1
jax: 0.10.0
libtpu: 0.0.40
codegen_flags: <defaults>
</compile_context>

<pallas_src>
import functools

import jax
import jax.numpy as jnp
from jax.experimental import pallas as pl
from jax.experimental.pallas import tpu as pltpu


# ----------------------------------------------------------------------------
# Small helpers
# ----------------------------------------------------------------------------
def _round_up(v, m):
    return (v + m - 1) // m * m


def _sublane(dtype):
    # rows per vreg sublane group: 8 for 4-byte, 16 for 2-byte, 32 for 1-byte
    return max(8, 32 // jnp.dtype(dtype).itemsize)


_VMEM_CAP = None


def _vmem_capacity_bytes():
    """Per-core VMEM capacity (64 MiB on v7x, 128 MiB on v5e/v6e)."""
    global _VMEM_CAP
    if _VMEM_CAP is None:
        try:
            _VMEM_CAP = int(pltpu.get_tpu_info().vmem_capacity_bytes)
        except Exception:  # capability query only; fall back conservatively
            _VMEM_CAP = 64 << 20
    return _VMEM_CAP


_SINGLE_BUFFER_WEIGHTS = None


def _single_buffer_supported():
    """One-time compile-only probe: does this JAX accept pipeline_mode=Buffered(1)?

    Uses .lower().compile() on ShapeDtypeStructs so it is safe to call even from
    inside an outer jit trace. A failure only disables the single-buffer
    optimization (falls back to default double-buffered resident weights); it
    never changes kernel semantics, so the broad catch cannot mask a real bug.
    """
    global _SINGLE_BUFFER_WEIGHTS
    if _SINGLE_BUFFER_WEIGHTS is not None:
        return _SINGLE_BUFFER_WEIGHTS
    try:
        def _probe_kernel(x_ref, w_ref, o_ref):
            o_ref[...] = x_ref[...] + w_ref[...]

        fn = pl.pallas_call(
            _probe_kernel,
            out_shape=jax.ShapeDtypeStruct((16, 128), jnp.float32),
            grid=(2,),
            in_specs=[
                pl.BlockSpec((8, 128), lambda i: (i, 0)),
                pl.BlockSpec((8, 128), lambda i: (0, 0),
                             pipeline_mode=pl.Buffered(buffer_count=1)),
            ],
            out_specs=pl.BlockSpec((8, 128), lambda i: (i, 0)),
        )
        jax.jit(fn).lower(
            jax.ShapeDtypeStruct((16, 128), jnp.float32),
            jax.ShapeDtypeStruct((8, 128), jnp.float32),
        ).compile()
        _SINGLE_BUFFER_WEIGHTS = True
    except Exception:  # capability probe only (see docstring)
        _SINGLE_BUFFER_WEIGHTS = False
    return _SINGLE_BUFFER_WEIGHTS


def _pick_tile_m(N, *, tile_m_max, sublane, min_steps):
    """Row-tile size: sublane-aligned, >= min_steps grid steps when N permits
    (megacore on v7x), minimal zero-row padding waste, largest tile on ties."""
    N_al = _round_up(N, sublane)
    tile_m_max = max(sublane, tile_m_max // sublane * sublane)
    if N_al <= 256 and N_al <= tile_m_max:
        return min(N_al, tile_m_max)  # tiny batch: one lane-dense tile
    cands = {c for c in (1024, 512, 384, 256, 128) if sublane <= c <= tile_m_max}
    cands.add(min(tile_m_max, N_al))
    cands.add(min(tile_m_max,
                  max(sublane, _round_up(pl.cdiv(N_al, max(min_steps, 1)), sublane))))
    best_key, best_t = None, sublane
    for t in sorted(cands):
        n_p = _round_up(N_al, t)
        steps = n_p // t
        waste = n_p - N
        key = (0 if steps >= min_steps else 1, waste, -t)
        if best_key is None or key < best_key:
            best_key, best_t = key, t
    return best_t


# ----------------------------------------------------------------------------
# Kernels
# ----------------------------------------------------------------------------
def _res_kernel_resident(x_ref, w1_ref, b1_ref, w2_ref, b2_ref, o_ref):
    """out = SiLU(SiLU(x @ W1 + b1) @ W2 + b2) + x for one row tile.

    Both (dim_p, dim_p) weights stay resident in VMEM. MXU operand dtype
    follows the weight dtype; bias / SiLU / residual math is always f32.
    """
    x = x_ref[...]
    h = jnp.dot(x.astype(w1_ref.dtype), w1_ref[...],
                preferred_element_type=jnp.float32) + b1_ref[...]
    h = h * jax.nn.sigmoid(h)
    y = jnp.dot(h.astype(w2_ref.dtype), w2_ref[...],
                preferred_element_type=jnp.float32) + b2_ref[...]
    y = y * jax.nn.sigmoid(y)
    o_ref[...] = (y + x.astype(jnp.float32)).astype(o_ref.dtype)


def _res_kernel_chunked(x_ref, w1_ref, b1_ref, w2_ref, b2_ref, o_ref, acc_ref):
    """Large-dim path: feature-chunk j holds W1[:, j-block] and W2[j-block, :].

    h_j = SiLU(x @ W1[:, j] + b1_j)   (full column slice of h, independent per j)
    acc += h_j @ W2[j, :]             (f32 VMEM accumulator)
    finalize: out = SiLU(acc + b2) + x
    """
    j = pl.program_id(1)

    @pl.when(j == 0)
    def _():
        acc_ref[...] = jnp.zeros_like(acc_ref)

    x = x_ref[...]
    h = jnp.dot(x.astype(w1_ref.dtype), w1_ref[...],
                preferred_element_type=jnp.float32) + b1_ref[...]
    h = h * jax.nn.sigmoid(h)
    acc_ref[...] += jnp.dot(h.astype(w2_ref.dtype), w2_ref[...],
                            preferred_element_type=jnp.float32)

    @pl.when(j == pl.num_programs(1) - 1)
    def _():
        y = acc_ref[...] + b2_ref[...]
        y = y * jax.nn.sigmoid(y)
        o_ref[...] = (y + x.astype(jnp.float32)).astype(o_ref.dtype)


# ----------------------------------------------------------------------------
# pallas_call builders
# ----------------------------------------------------------------------------
def _build_resident_call(N_p, dim_p, tile_m, x_dtype, vmem_limit, cost, single_buf):
    w_kwargs = (
        {"pipeline_mode": pl.Buffered(buffer_count=1)} if single_buf else {}
    )
    return pl.pallas_call(
        _res_kernel_resident,
        out_shape=jax.ShapeDtypeStruct((N_p, dim_p), x_dtype),
        grid=(N_p // tile_m,),
        in_specs=[
            pl.BlockSpec((tile_m, dim_p), lambda i: (i, 0)),                 # x tile
            pl.BlockSpec((dim_p, dim_p), lambda i: (0, 0), **w_kwargs),      # W1^T (resident)
            pl.BlockSpec((1, dim_p), lambda i: (0, 0)),                      # b1
            pl.BlockSpec((dim_p, dim_p), lambda i: (0, 0), **w_kwargs),      # W2^T (resident)
            pl.BlockSpec((1, dim_p), lambda i: (0, 0)),                      # b2
        ],
        out_specs=pl.BlockSpec((tile_m, dim_p), lambda i: (i, 0)),
        compiler_params=pltpu.CompilerParams(
            dimension_semantics=("parallel",),
            vmem_limit_bytes=vmem_limit,
        ),
        cost_estimate=cost,
    )


def _build_chunked_call(N_p, dim_p, tile_m, tk, x_dtype, vmem_limit, cost):
    return pl.pallas_call(
        _res_kernel_chunked,
        out_shape=jax.ShapeDtypeStruct((N_p, dim_p), x_dtype),
        grid=(N_p // tile_m, dim_p // tk),
        in_specs=[
            pl.BlockSpec((tile_m, dim_p), lambda i, j: (i, 0)),   # x tile (resident over j)
            pl.BlockSpec((dim_p, tk), lambda i, j: (0, j)),       # W1^T column slab
            pl.BlockSpec((1, tk), lambda i, j: (0, j)),           # b1 slab
            pl.BlockSpec((tk, dim_p), lambda i, j: (j, 0)),       # W2^T row slab
            pl.BlockSpec((1, dim_p), lambda i, j: (0, 0)),        # b2
        ],
        out_specs=pl.BlockSpec((tile_m, dim_p), lambda i, j: (i, 0)),
        scratch_shapes=[pltpu.VMEM((tile_m, dim_p), jnp.float32)],
        compiler_params=pltpu.CompilerParams(
            dimension_semantics=("parallel", "arbitrary"),
            vmem_limit_bytes=vmem_limit,
        ),
        cost_estimate=cost,
    )


# ----------------------------------------------------------------------------
# Public wrappers
# ----------------------------------------------------------------------------
def prepare_res_params(w1, b1, w2, b2, *, mxu_dtype=None):
    """One-time parameter glue: transpose (out,in)->(in,out), pad the feature
    dim to a multiple of 128, cast weights to the MXU operand dtype, keep
    biases f32. Call once and reuse across res_forward calls."""
    w1 = jnp.asarray(w1)
    w2 = jnp.asarray(w2)
    b1 = jnp.asarray(b1)
    b2 = jnp.asarray(b2)
    dim = w1.shape[0]
    if mxu_dtype is None:
        mxu_dtype = w1.dtype
    dim_p = _round_up(dim, 128)
    pad = dim_p - dim
    w1_p = jnp.pad(w1.T, ((0, pad), (0, pad))).astype(mxu_dtype)
    w2_p = jnp.pad(w2.T, ((0, pad), (0, pad))).astype(mxu_dtype)
    b1_p = jnp.pad(b1.astype(jnp.float32), (0, pad)).reshape(1, dim_p)
    b2_p = jnp.pad(b2.astype(jnp.float32), (0, pad)).reshape(1, dim_p)
    return w1_p, b1_p, w2_p, b2_p


def res_forward(x, w1_p, b1_p, w2_p, b2_p, *, tile_m=512, min_grid_steps=2,
                force_chunked=False, chunk_k=None):
    """x: (N, dim), unpadded. w*_p/b*_p: prepared via prepare_res_params.

    All configuration is derived from static shapes, so this function is
    jit-compatible (wrap in jax.jit with static tile_m/min_grid_steps).
    """
    N, dim = x.shape
    dim_p = w1_p.shape[0]
    x_dtype = x.dtype
    x_itemsize = jnp.dtype(x_dtype).itemsize
    w_itemsize = jnp.dtype(w1_p.dtype).itemsize
    sublane = _sublane(x_dtype)

    # --- VMEM budget (generation-aware) ------------------------------------
    cap = _vmem_capacity_bytes()
    budget = cap * 4 // 5                     # leave ~20% for compiler temps
    headroom = 4 << 20

    # --- row-tile selection --------------------------------------------------
    # per-row VMEM cost: x + out (double-buffered) + worst-case f32 accumulator
    per_row_bytes = dim_p * (4 * x_itemsize + 4)
    act_budget = max(2 << 20, budget // 3)
    tile_cap = max(sublane, act_budget // per_row_bytes // sublane * sublane)
    tile_m_eff = _pick_tile_m(
        N, tile_m_max=min(_round_up(tile_m, sublane), tile_cap),
        sublane=sublane, min_steps=min_grid_steps)
    N_p = _round_up(_round_up(N, sublane), tile_m_eff)
    n_row_tiles = N_p // tile_m_eff
    act_bytes = 2 * 2 * tile_m_eff * dim_p * x_itemsize

    # --- resident vs. chunked weights ---------------------------------------
    single_buf = _single_buffer_supported()
    weight_buffers = 1 if single_buf else 2
    resident_weight_bytes = 2 * dim_p * dim_p * w_itemsize * weight_buffers
    use_chunked = force_chunked or (
        resident_weight_bytes + act_bytes + headroom > budget)

    flops = 4 * N_p * dim_p * dim_p           # two (N,d)x(d,d) matmuls
    transcendentals = 2 * N_p * dim_p         # two sigmoids per element

    if not use_chunked:
        needed = resident_weight_bytes + act_bytes + 8 * dim_p * 4 + headroom
        vmem_limit = int(min(budget, max(32 << 20, needed)))
        cost = pl.CostEstimate(
            flops=flops, transcendentals=transcendentals,
            bytes_accessed=(2 * N_p * dim_p * x_itemsize
                            + 2 * dim_p * dim_p * w_itemsize + 2 * dim_p * 4))
        call = _build_resident_call(N_p, dim_p, tile_m_eff, x_dtype,
                                    vmem_limit, cost, single_buf)
    else:
        acc_bytes = tile_m_eff * dim_p * 4
        avail_w = max(0, budget - act_bytes - acc_bytes - headroom)
        tk_max = max(128, avail_w // (4 * dim_p * w_itemsize))
        if chunk_k is not None:
            tk = int(chunk_k)
        else:
            n128 = dim_p // 128
            tk = 128
            for m in range(n128, 0, -1):
                if n128 % m == 0 and 128 * m <= tk_max:
                    tk = 128 * m
                    break
        # TODO(synk): if even tk=128 slabs do not fit (extremely large dim on
        # v7x), additionally tile the output columns of W2; and consider
        # fp8 (v7x) / int8 (v6e) weight compression to halve slab traffic.
        needed = 4 * dim_p * tk * w_itemsize + act_bytes + acc_bytes + headroom
        vmem_limit = int(min(budget, max(32 << 20, needed)))
        cost = pl.CostEstimate(
            flops=flops, transcendentals=transcendentals,
            bytes_accessed=(2 * N_p * dim_p * x_itemsize
                            + n_row_tiles * 2 * dim_p * dim_p * w_itemsize
                            + 2 * dim_p * 4))
        call = _build_chunked_call(N_p, dim_p, tile_m_eff, tk, x_dtype,
                                   vmem_limit, cost)

    # --- pad rows/cols only when needed, run, slice back ---------------------
    if N_p != N or dim_p != dim:
        x_p = jnp.pad(x, ((0, N_p - N), (0, dim_p - dim)))
    else:
        x_p = x
    out_p = call(x_p, w1_p, b1_p, w2_p, b2_p)
    if N_p != N or dim_p != dim:
        out_p = out_p[:N, :dim]
    return out_p


def res_apply(x, w1, b1, w2, b2, *, mxu_dtype=None, **kwargs):
    """Convenience: prepare params (per call) and run. Prefer calling
    prepare_res_params once + res_forward for repeated use."""
    params = prepare_res_params(w1, b1, w2, b2, mxu_dtype=mxu_dtype)
    return res_forward(x, *params, **kwargs)


# ----------------------------------------------------------------------------
# Reference + tests
# ----------------------------------------------------------------------------
def res_reference(x, w1, b1, w2, b2):
    """Pure-JAX f32 reference matching the PyTorch forward."""
    xf = x.astype(jnp.float32)
    w1f = jnp.asarray(w1).astype(jnp.float32)
    w2f = jnp.asarray(w2).astype(jnp.float32)
    b1f = jnp.asarray(b1).astype(jnp.float32)
    b2f = jnp.asarray(b2).astype(jnp.float32)

    def silu(v):
        return v * jax.nn.sigmoid(v)

    h = silu(xf @ w1f.T + b1f)
    y = silu(h @ w2f.T + b2f)
    return y + xf


def _make_case(key, batch, dim, dtype):
    kx, kw1, kb1, kw2, kb2 = jax.random.split(key, 5)
    bound = 1.0 / (dim ** 0.5)
    x = jax.random.normal(kx, (batch, dim), jnp.float32).astype(dtype)
    w1 = jax.random.uniform(kw1, (dim, dim), jnp.float32, -bound, bound).astype(dtype)
    b1 = jax.random.uniform(kb1, (dim,), jnp.float32, -bound, bound)
    w2 = jax.random.uniform(kw2, (dim, dim), jnp.float32, -bound, bound).astype(dtype)
    b2 = jax.random.uniform(kb2, (dim,), jnp.float32, -bound, bound)
    return x, w1, b1, w2, b2


if __name__ == "__main__":
    key = jax.random.PRNGKey(0)
    k_a, k_b, k_c, k_d, k_e = jax.random.split(key, 5)

    # A) Small, module-consistent shapes (dim=32 exercises the lane-pad path).
    x, w1, b1, w2, b2 = _make_case(k_a, batch=8, dim=32, dtype=jnp.float32)
    out = jax.block_until_ready(res_apply(x, w1, b1, w2, b2))
    ref = res_reference(x, w1, b1, w2, b2)
    assert out.shape == (8, 32)
    assert jnp.allclose(out, ref, atol=1e-5, rtol=1e-5), "f32 small case mismatch"

    # B) Awkward batch (tests waste-minimizing tile pick + multi-step grid).
    x, w1, b1, w2, b2 = _make_case(k_b, batch=300, dim=256, dtype=jnp.float32)
    params = prepare_res_params(w1, b1, w2, b2)          # prepared once
    out = jax.block_until_ready(res_forward(x, *params, tile_m=512))
    ref = res_reference(x, w1, b1, w2, b2)
    assert jnp.allclose(out, ref, atol=2e-3, rtol=2e-3), "f32 tiled case mismatch"

    # C) Native bf16 path (bf16 activations/weights, f32 accumulate, 16-row sublane).
    x, w1, b1, w2, b2 = _make_case(k_c, batch=512, dim=256, dtype=jnp.bfloat16)
    out = jax.block_until_ready(res_apply(x, w1, b1, w2, b2, tile_m=512))
    ref = res_reference(x, w1, b1, w2, b2)
    assert jnp.allclose(out.astype(jnp.float32), ref, atol=5e-2, rtol=5e-2), \
        "bf16 case mismatch"

    # D) Opt-in bf16 MXU operands for f32 inputs (residual stays exact f32).
    x, w1, b1, w2, b2 = _make_case(k_d, batch=256, dim=256, dtype=jnp.float32)
    out = jax.block_until_ready(
        res_apply(x, w1, b1, w2, b2, mxu_dtype=jnp.bfloat16, tile_m=512))
    ref = res_reference(x, w1, b1, w2, b2)
    assert jnp.allclose(out, ref, atol=5e-2, rtol=5e-2), "bf16-operand case mismatch"

    # E) Force the large-dim chunked-weight path (2 feature chunks) at small size
    #    to validate its correctness on every generation.
    x, w1, b1, w2, b2 = _make_case(k_e, batch=128, dim=256, dtype=jnp.float32)
    out = jax.block_until_ready(
        res_apply(x, w1, b1, w2, b2, force_chunked=True, chunk_k=128))
    ref = res_reference(x, w1, b1, w2, b2)
    assert jnp.allclose(out, ref, atol=2e-3, rtol=2e-3), "chunked path mismatch"

    print("KERNEL_OK")
</pallas_src>

<mosaic_0001>
module attributes {stable_mosaic.version = 11 : i64} {
  func.func @_res_kernel_resident(%arg0: i32, %arg1: memref<8x128xf32, #tpu.memory_space<vmem>>, %arg2: memref<128x128xf32, #tpu.memory_space<vmem>>, %arg3: memref<1x128xf32, #tpu.memory_space<vmem>>, %arg4: memref<128x128xf32, #tpu.memory_space<vmem>>, %arg5: memref<1x128xf32, #tpu.memory_space<vmem>>, %arg6: memref<8x128xf32, #tpu.memory_space<vmem>>) attributes {dimension_semantics = [#tpu.dimension_semantics<parallel>], iteration_bounds = array<i64: 1>, scalar_prefetch = 0 : i64, scratch_operands = 0 : i64, tpu.core_type = #tpu.core_type<tc>, window_params = [{transform_indices = @transform_0, window_bounds = array<i64: 8, 128>}, {pipeline_mode = #tpu.pipeline_mode<synchronous>, transform_indices = @transform_1, window_bounds = array<i64: 128, 128>}, {pipeline_mode = #tpu.pipeline_mode<synchronous>, transform_indices = @transform_2, window_bounds = array<i64: 1, 128>}, {pipeline_mode = #tpu.pipeline_mode<synchronous>, transform_indices = @transform_3, window_bounds = array<i64: 128, 128>}, {pipeline_mode = #tpu.pipeline_mode<synchronous>, transform_indices = @transform_4, window_bounds = array<i64: 1, 128>}, {transform_indices = @transform_5, window_bounds = array<i64: 8, 128>}]} {
    %c0 = arith.constant 0 : index
    %c0_0 = arith.constant 0 : index
    %0 = vector.load %arg1[%c0, %c0_0] : memref<8x128xf32, #tpu.memory_space<vmem>>, vector<8x128xf32>
    %c0_1 = arith.constant 0 : index
    %c0_2 = arith.constant 0 : index
    %1 = vector.load %arg2[%c0_1, %c0_2] : memref<128x128xf32, #tpu.memory_space<vmem>>, vector<128x128xf32>
    %cst = arith.constant dense<0.000000e+00> : vector<8x128xf32>
    %2 = tpu.matmul %0, %1, %cst {dimension_numbers = #tpu.dot_dimension_numbers<[1], [0], [0], [1], [0, 0, 1, 1], [], []>} : vector<8x128xf32>, vector<128x128xf32>, vector<8x128xf32> -> vector<8x128xf32>
    %c0_3 = arith.constant 0 : index
    %c0_4 = arith.constant 0 : index
    %3 = vector.load %arg3[%c0_3, %c0_4] : memref<1x128xf32, #tpu.memory_space<vmem>>, vector<1x128xf32>
    %4 = vector.broadcast %3 : vector<1x128xf32> to vector<8x128xf32>
    %5 = arith.addf %2, %4 : vector<8x128xf32>
    %6 = arith.negf %5 : vector<8x128xf32>
    %7 = math.exp %6 : vector<8x128xf32>
    %cst_5 = arith.constant 1.000000e+00 : f32
    %8 = vector.broadcast %cst_5 : f32 to vector<8x128xf32>
    %9 = arith.addf %8, %7 : vector<8x128xf32>
    %10 = arith.divf %8, %9 : vector<8x128xf32>
    %11 = arith.mulf %5, %10 : vector<8x128xf32>
    %c0_6 = arith.constant 0 : index
    %c0_7 = arith.constant 0 : index
    %12 = vector.load %arg4[%c0_6, %c0_7] : memref<128x128xf32, #tpu.memory_space<vmem>>, vector<128x128xf32>
    %cst_8 = arith.constant dense<0.000000e+00> : vector<8x128xf32>
    %13 = tpu.matmul %11, %12, %cst_8 {dimension_numbers = #tpu.dot_dimension_numbers<[1], [0], [0], [1], [0, 0, 1, 1], [], []>} : vector<8x128xf32>, vector<128x128xf32>, vector<8x128xf32> -> vector<8x128xf32>
    %c0_9 = arith.constant 0 : index
    %c0_10 = arith.constant 0 : index
    %14 = vector.load %arg5[%c0_9, %c0_10] : memref<1x128xf32, #tpu.memory_space<vmem>>, vector<1x128xf32>
    %15 = vector.broadcast %14 : vector<1x128xf32> to vector<8x128xf32>
    %16 = arith.addf %13, %15 : vector<8x128xf32>
    %17 = arith.negf %16 : vector<8x128xf32>
    %18 = math.exp %17 : vector<8x128xf32>
    %cst_11 = arith.constant 1.000000e+00 : f32
    %19 = vector.broadcast %cst_11 : f32 to vector<8x128xf32>
    %20 = arith.addf %19, %18 : vector<8x128xf32>
    %21 = arith.divf %19, %20 : vector<8x128xf32>
    %22 = arith.mulf %16, %21 : vector<8x128xf32>
    %23 = arith.addf %22, %0 : vector<8x128xf32>
    %c0_12 = arith.constant 0 : index
    %c0_13 = arith.constant 0 : index
    %24 = vector.load %arg6[%c0_12, %c0_13] : memref<8x128xf32, #tpu.memory_space<vmem>>, vector<8x128xf32>
    tpu.vector_store %arg6[%c0_12, %c0_13], %23 {strides = array<i32>} : memref<8x128xf32, #tpu.memory_space<vmem>>, vector<8x128xf32>,
    return
  }
  func.func @transform_0(%arg0: i32) -> (i32, i32) {
    %c0_i32 = arith.constant 0 : i32
    %c0_i32_0 = arith.constant 0 : i32
    return %arg0, %c0_i32 : i32, i32
  }
  func.func @transform_1(%arg0: i32) -> (i32, i32) {
    %c0_i32 = arith.constant 0 : i32
    %c0_i32_0 = arith.constant 0 : i32
    %c0_i32_1 = arith.constant 0 : i32
    return %c0_i32, %c0_i32_0 : i32, i32
  }
  func.func @transform_2(%arg0: i32) -> (i32, i32) {
    %c0_i32 = arith.constant 0 : i32
    %c0_i32_0 = arith.constant 0 : i32
    %c0_i32_1 = arith.constant 0 : i32
    return %c0_i32, %c0_i32_0 : i32, i32
  }
  func.func @transform_3(%arg0: i32) -> (i32, i32) {
    %c0_i32 = arith.constant 0 : i32
    %c0_i32_0 = arith.constant 0 : i32
    %c0_i32_1 = arith.constant 0 : i32
    return %c0_i32, %c0_i32_0 : i32, i32
  }
  func.func @transform_4(%arg0: i32) -> (i32, i32) {
    %c0_i32 = arith.constant 0 : i32
    %c0_i32_0 = arith.constant 0 : i32
    %c0_i32_1 = arith.constant 0 : i32
    return %c0_i32, %c0_i32_0 : i32, i32
  }
  func.func @transform_5(%arg0: i32) -> (i32, i32) {
    %c0_i32 = arith.constant 0 : i32
    %c0_i32_0 = arith.constant 0 : i32
    return %arg0, %c0_i32 : i32, i32
  }
}

</mosaic_0001>

<llo_original>
// kernel: tpu_custom_call.1
$region0: #{tpu_custom_call.1}
  #allocation0 [shape = 'u32[]', space=smem, size = 0x4, offset = 0x4, fixed_abs, tag = 'smem constant byte address 0x4 - core index']
  #allocation1 [shape = 'u32[144,128]{1,0:T(1,128)}', space=vmem, size = 0x12000, scoped, tag = 'internal scratch']
  %s0 = inlined_call_operand.hbm [shape: f32[8,128], index: 0, kind: input, shape index: {}]
  %s1 = inlined_call_operand.hbm [shape: f32[128,128], index: 1, kind: input, shape index: {}]
  %s2 = inlined_call_operand.vmem [shape: f32[1,128], index: 2, kind: input, shape index: {}]
  %s3 = inlined_call_operand.hbm [shape: f32[128,128], index: 3, kind: input, shape index: {}]
  %s4 = inlined_call_operand.vmem [shape: f32[1,128], index: 4, kind: input, shape index: {}]
  %s5 = inlined_call_operand.hbm [shape: f32[8,128], index: 5, kind: output, shape index: {}]
  %s6 = sld [smem:[#allocation0]]
  $region42: #{tpu_custom_call.1} parent=0
    _
  %s8 = ssub.s32 1, %s6
  %s9 = scalar_select 0, %s8, %s6
  $region1: #{tpu_custom_call.1} parent=0
    #allocation2 [shape = 'u8[4096]{0}', space=vmem, size = 0x1000, scoped, tag = 'input window, operand 0, single buffered']
    #allocation3 [shape = 's32[1]{0}', space=sflag, size = 0x4, scoped, tag = 'scoped memory for tpu_custom_call.1']
    #allocation4 [shape = 's32[1]{0}', space=sflag, size = 0x4, scoped, tag = 'scoped memory for tpu_custom_call.1']
    #allocation5 [shape = 'u8[65536]{0}', space=vmem, size = 0x10000, scoped, tag = 'input window, operand 1, single buffered']
    #allocation6 [shape = 's32[1]{0}', space=sflag, size = 0x4, scoped, tag = 'scoped memory for tpu_custom_call.1']
    #allocation7 [shape = 'u8[65536]{0}', space=vmem, size = 0x10000, scoped, tag = 'input window, operand 3, single buffered']
    #allocation8 [shape = 'u8[4096]{0}', space=vmem, size = 0x1000, scoped, tag = 'output window, operand 0, single buffered']
    %10 = vsyncpa [#allocation3], 0
    %11 = vsyncpa [#allocation6], 0
    %12 = vsyncpa [#allocation4], 0
    // Predicated region
    $region2: #{tpu_custom_call.1} parent=1 // pred_check
      _
    $region3: #{tpu_custom_call.1} parent=1 // pred_check_branch
      %14 = sbr.rel (0) target = $region5
    $region4: #{tpu_custom_call.1} parent=1 // pred_region
      %s16 = ssub.s32 128, 128
      %17 = vsyncadd [#allocation3], %s16
      %s19 = sshll.u32 [#allocation2], 4
      %s20 = int_to_ptr.vmem [resolvable:$true] %s19
      %22 = dma.hbm_to_vmem [thread:$0]  %s0, 128, %s20, [#allocation3]
    $region5: #{tpu_custom_call.1} parent=1 // pred_fallthru
      _
    // Predicated region
    $region6: #{tpu_custom_call.1} parent=1 // pred_check
      _
    $region7: #{tpu_custom_call.1} parent=1 // pred_check_branch
      %24 = sbr.rel (0) target = $region9
    $region8: #{tpu_custom_call.1} parent=1 // pred_region
      %s26 = ssub.s32 2048, 2048
      %27 = vsyncadd [#allocation6], %s26
      %s28 = sshll.u32 [#allocation5], 4
      %s29 = int_to_ptr.vmem [resolvable:$true] %s28
      %34 = dma.hbm_to_vmem [thread:$0]  %s1, 2048, %s29, [#allocation6], 128, 128, 8
    $region9: #{tpu_custom_call.1} parent=1 // pred_fallthru
      _
    // Predicated region
    $region10: #{tpu_custom_call.1} parent=1 // pred_check
      _
    $region11: #{tpu_custom_call.1} parent=1 // pred_check_branch
      %36 = sbr.rel (0) target = $region13
    $region12: #{tpu_custom_call.1} parent=1 // pred_region
      _
    $region13: #{tpu_custom_call.1} parent=1 // pred_fallthru
      _
    // Predicated region
    $region14: #{tpu_custom_call.1} parent=1 // pred_check
      _
    $region15: #{tpu_custom_call.1} parent=1 // pred_check_branch
      %38 = sbr.rel (0) target = $region17
    $region16: #{tpu_custom_call.1} parent=1 // pred_region
      %s40 = ssub.s32 2048, 2048
      %41 = vsyncadd [#allocation6], %s40
      %s42 = sshll.u32 [#allocation7], 4
      %s43 = int_to_ptr.vmem [resolvable:$true] %s42
      %48 = dma.hbm_to_vmem [thread:$0]  %s3, 2048, %s43, [#allocation6], 128, 128, 8
    $region17: #{tpu_custom_call.1} parent=1 // pred_fallthru
      _
    // Predicated region
    $region18: #{tpu_custom_call.1} parent=1 // pred_check
      _
    $region19: #{tpu_custom_call.1} parent=1 // pred_check_branch
      %50 = sbr.rel (0) target = $region21
    $region20: #{tpu_custom_call.1} parent=1 // pred_region
      _
    $region21: #{tpu_custom_call.1} parent=1 // pred_fallthru
      _
    // Predicated region
    $region22: #{tpu_custom_call.1} parent=1 // pred_check
      _
    $region23: #{tpu_custom_call.1} parent=1 // pred_check_branch
      %52 = sbr.rel (0) target = $region25
    $region24: #{tpu_custom_call.1} parent=1 // pred_region
      %53 = dma.done [#allocation3], 128
    $region25: #{tpu_custom_call.1} parent=1 // pred_fallthru
      _
    // Predicated region
    $region26: #{tpu_custom_call.1} parent=1 // pred_check
      _
    $region27: #{tpu_custom_call.1} parent=1 // pred_check_branch
      %55 = sbr.rel (0) target = $region29
    $region28: #{tpu_custom_call.1} parent=1 // pred_region
      %56 = dma.done [#allocation6], 2048
    $region29: #{tpu_custom_call.1} parent=1 // pred_fallthru
      _
    // Predicated region
    $region30: #{tpu_custom_call.1} parent=1 // pred_check
      _
    $region31: #{tpu_custom_call.1} parent=1 // pred_check_branch
      %58 = sbr.rel (0) target = $region33
    $region32: #{tpu_custom_call.1} parent=1 // pred_region
      %59 = dma.done [#allocation6], 2048
    $region33: #{tpu_custom_call.1} parent=1 // pred_fallthru
      _
    %v60 = vld [vmem:[#allocation2] sm:$0xff]
    %v61 = vld [vmem:[#allocation5] sm:$0xff]
    %v62 = vld [vmem:[#allocation5 + $0x8] sm:$0xff]
    %v63 = vld [vmem:[#allocation5 + $0x10] sm:$0xff]
    %v64 = vld [vmem:[#allocation5 + $0x18] sm:$0xff]
    %v65 = vld [vmem:[#allocation5 + $0x20] sm:$0xff]
    %v66 = vld [vmem:[#allocation5 + $0x28] sm:$0xff]
    %v67 = vld [vmem:[#allocation5 + $0x30] sm:$0xff]
    %v68 = vld [vmem:[#allocation5 + $0x38] sm:$0xff]
    %v69 = vld [vmem:[#allocation5 + $0x40] sm:$0xff]
    %v70 = vld [vmem:[#allocation5 + $0x48] sm:$0xff]
    %v71 = vld [vmem:[#allocation5 + $0x50] sm:$0xff]
    %v72 = vld [vmem:[#allocation5 + $0x58] sm:$0xff]
    %v73 = vld [vmem:[#allocation5 + $0x60] sm:$0xff]
    %v74 = vld [vmem:[#allocation5 + $0x68] sm:$0xff]
    %v75 = vld [vmem:[#allocation5 + $0x70] sm:$0xff]
    %v76 = vld [vmem:[#allocation5 + $0x78] sm:$0xff]
    %v77 = vld [vmem:[%s2] sm:$0x1]
    %v79 = vlaneseq
    %v80 = vshrl.u32 %v79, 7
    %v81 = vsub.s32 0, %v80
    %v82 = vrot.slane %v77, %v81
    %84 = vmatprep.subr.mxu0 0.0
    %85 = vmatpush1.msra.mxu0 %v61
    %86 = vmatprep.subr.mxu0 0.0
    %87 = vmatpush1.msra.mxu0 %v62
    %88 = vmatprep.subr.mxu0 0.0
    %89 = vmatpush1.msra.mxu0 %v63
    %90 = vmatprep.subr.mxu0 0.0
    %91 = vmatpush1.msra.mxu0 %v64
    %92 = vmatprep.subr.mxu0 0.0
    %93 = vmatpush1.msra.mxu0 %v65
    %94 = vmatprep.subr.mxu0 0.0
    %95 = vmatpush1.msra.mxu0 %v66
    %96 = vmatprep.subr.mxu0 0.0
    %97 = vmatpush1.msra.mxu0 %v67
    %98 = vmatprep.subr.mxu0 0.0
    %99 = vmatpush1.msra.mxu0 %v68
    %100 = vmatprep.subr.mxu0 0.0
    %101 = vmatpush1.msra.mxu0 %v69
    %102 = vmatprep.subr.mxu0 0.0
    %103 = vmatpush1.msra.mxu0 %v70
    %104 = vmatprep.subr.mxu0 0.0
    %105 = vmatpush1.msra.mxu0 %v71
    %106 = vmatprep.subr.mxu0 0.0
    %107 = vmatpush1.msra.mxu0 %v72
    %108 = vmatprep.subr.mxu0 0.0
    %109 = vmatpush1.msra.mxu0 %v73
    %110 = vmatprep.subr.mxu0 0.0
    %111 = vmatpush1.msra.mxu0 %v74
    %112 = vmatprep.subr.mxu0 0.0
    %113 = vmatpush1.msra.mxu0 %v75
    %114 = vmatprep.subr.mxu0 0.0
    %115 = vmatpush1.msra.mxu0 %v76
    %116 = vmatprep.subr.mxu0 0.0
    %117 = vmatpush1.msra.mxu0 0.0
    %118 = vmatprep.subr.mxu0 0.0
    %119 = vmatpush1.msra.mxu0 0.0
    %120 = vmatprep.subr.mxu0 0.0
    %121 = vmatpush1.msra.mxu0 0.0
    %122 = vmatprep.subr.mxu0 0.0
    %123 = vmatpush1.msra.mxu0 0.0
    %124 = vmatprep.subr.mxu0 0.0
    %125 = vmatpush1.msra.mxu0 0.0
    %126 = vmatprep.subr.mxu0 0.0
    %127 = vmatpush1.msra.mxu0 0.0
    %128 = vmatprep.subr.mxu0 0.0
    %129 = vmatpush1.msra.mxu0 0.0
    %130 = vmatprep.subr.mxu0 0.0
    %131 = vmatpush1.msra.mxu0 0.0
    %132 = vmatprep.subr.mxu0 0.0
    %133 = vmatpush1.msra.mxu0 0.0
    %134 = vmatprep.subr.mxu0 0.0
    %135 = vmatpush1.msra.mxu0 0.0
    %136 = vmatprep.subr.mxu0 0.0
    %137 = vmatpush1.msra.mxu0 0.0
    %138 = vmatprep.subr.mxu0 0.0
    %139 = vmatpush1.msra.mxu0 0.0
    %140 = vmatprep.subr.mxu0 0.0
    %141 = vmatpush1.msra.mxu0 0.0
    %142 = vmatprep.subr.mxu0 0.0
    %143 = vmatpush1.msra.mxu0 0.0
    %144 = vmatprep.subr.mxu0 0.0
    %145 = vmatpush1.msra.mxu0 0.0
    %146 = vmatprep.subr.mxu0 0.0
    %147 = vmatpush1.msra.mxu0 0.0
    %148 = vmatprep.mubr.f32.mxu0 0.0
    %149 = vmatmul.mubr.f32.gmra.mrb[0].mxu0 %v60
    %v150 = vpop.f32.mrb[0].mxu0
    %v151 = vadd.f32 %v82, %v150
    %v152 = vpop.f32.mrb[0].mxu0
    %153 = vdwg.mxu0
    %v154 = vxor.u32 %v151, 2147483648
    %v155 = vmul.f32 %v154, 1.442695
    %v156 = vpow.pop %v155
    %v157 = vadd.f32 %v156, 1.0
    %v158 = vrcp.pop %v157
    %v159 = vmul.f32 1.0, %v158
    %v160 = vmul.f32 %v151, %v159
    %v161 = vld [vmem:[#allocation7] sm:$0xff]
    %v162 = vld [vmem:[#allocation7 + $0x8] sm:$0xff]
    %v163 = vld [vmem:[#allocation7 + $0x10] sm:$0xff]
    %v164 = vld [vmem:[#allocation7 + $0x18] sm:$0xff]
    %v165 = vld [vmem:[#allocation7 + $0x20] sm:$0xff]
    %v166 = vld [vmem:[#allocation7 + $0x28] sm:$0xff]
    %v167 = vld [vmem:[#allocation7 + $0x30] sm:$0xff]
    %v168 = vld [vmem:[#allocation7 + $0x38] sm:$0xff]
    %v169 = vld [vmem:[#allocation7 + $0x40] sm:$0xff]
    %v170 = vld [vmem:[#allocation7 + $0x48] sm:$0xff]
    %v171 = vld [vmem:[#allocation7 + $0x50] sm:$0xff]
    %v172 = vld [vmem:[#allocation7 + $0x58] sm:$0xff]
    %v173 = vld [vmem:[#allocation7 + $0x60] sm:$0xff]
    %v174 = vld [vmem:[#allocation7 + $0x68] sm:$0xff]
    %v175 = vld [vmem:[#allocation7 + $0x70] sm:$0xff]
    %v176 = vld [vmem:[#allocation7 + $0x78] sm:$0xff]
    %v177 = vld [vmem:[%s4] sm:$0x1]
    %v179 = vlaneseq
    %v180 = vshrl.u32 %v179, 7
    %v181 = vsub.s32 0, %v180
    %v182 = vrot.slane %v177, %v181
    %184 = vmatprep.subr.mxu0 0.0
    %185 = vmatpush1.msra.mxu0 %v161
    %186 = vmatprep.subr.mxu0 0.0
    %187 = vmatpush1.msra.mxu0 %v162
    %188 = vmatprep.subr.mxu0 0.0
    %189 = vmatpush1.msra.mxu0 %v163
    %190 = vmatprep.subr.mxu0 0.0
    %191 = vmatpush1.msra.mxu0 %v164
    %192 = vmatprep.subr.mxu0 0.0
    %193 = vmatpush1.msra.mxu0 %v165
    %194 = vmatprep.subr.mxu0 0.0
    %195 = vmatpush1.msra.mxu0 %v166
    %196 = vmatprep.subr.mxu0 0.0
    %197 = vmatpush1.msra.mxu0 %v167
    %198 = vmatprep.subr.mxu0 0.0
    %199 = vmatpush1.msra.mxu0 %v168
    %200 = vmatprep.subr.mxu0 0.0
    %201 = vmatpush1.msra.mxu0 %v169
    %202 = vmatprep.subr.mxu0 0.0
    %203 = vmatpush1.msra.mxu0 %v170
    %204 = vmatprep.subr.mxu0 0.0
    %205 = vmatpush1.msra.mxu0 %v171
    %206 = vmatprep.subr.mxu0 0.0
    %207 = vmatpush1.msra.mxu0 %v172
    %208 = vmatprep.subr.mxu0 0.0
    %209 = vmatpush1.msra.mxu0 %v173
    %210 = vmatprep.subr.mxu0 0.0
    %211 = vmatpush1.msra.mxu0 %v174
    %212 = vmatprep.subr.mxu0 0.0
    %213 = vmatpush1.msra.mxu0 %v175
    %214 = vmatprep.subr.mxu0 0.0
    %215 = vmatpush1.msra.mxu0 %v176
    %216 = vmatprep.subr.mxu0 0.0
    %217 = vmatpush1.msra.mxu0 0.0
    %218 = vmatprep.subr.mxu0 0.0
    %219 = vmatpush1.msra.mxu0 0.0
    %220 = vmatprep.subr.mxu0 0.0
    %221 = vmatpush1.msra.mxu0 0.0
    %222 = vmatprep.subr.mxu0 0.0
    %223 = vmatpush1.msra.mxu0 0.0
    %224 = vmatprep.subr.mxu0 0.0
    %225 = vmatpush1.msra.mxu0 0.0
    %226 = vmatprep.subr.mxu0 0.0
    %227 = vmatpush1.msra.mxu0 0.0
    %228 = vmatprep.subr.mxu0 0.0
    %229 = vmatpush1.msra.mxu0 0.0
    %230 = vmatprep.subr.mxu0 0.0
    %231 = vmatpush1.msra.mxu0 0.0
    %232 = vmatprep.subr.mxu0 0.0
    %233 = vmatpush1.msra.mxu0 0.0
    %234 = vmatprep.subr.mxu0 0.0
    %235 = vmatpush1.msra.mxu0 0.0
    %236 = vmatprep.subr.mxu0 0.0
    %237 = vmatpush1.msra.mxu0 0.0
    %238 = vmatprep.subr.mxu0 0.0
    %239 = vmatpush1.msra.mxu0 0.0
    %240 = vmatprep.subr.mxu0 0.0
    %241 = vmatpush1.msra.mxu0 0.0
    %242 = vmatprep.subr.mxu0 0.0
    %243 = vmatpush1.msra.mxu0 0.0
    %244 = vmatprep.subr.mxu0 0.0
    %245 = vmatpush1.msra.mxu0 0.0
    %246 = vmatprep.subr.mxu0 0.0
    %247 = vmatpush1.msra.mxu0 0.0
    %248 = vmatprep.mubr.f32.mxu0 0.0
    %249 = vmatmul.mubr.f32.gmra.mrb[0].mxu0 %v160
    %v250 = vpop.f32.mrb[0].mxu0
    %v251 = vadd.f32 %v182, %v250
    %v252 = vpop.f32.mrb[0].mxu0
    %253 = vdwg.mxu0
    %v254 = vxor.u32 %v251, 2147483648
    %v255 = vmul.f32 %v254, 1.442695
    %v256 = vpow.pop %v255
    %v257 = vadd.f32 %v256, 1.0
    %v258 = vrcp.pop %v257
    %v259 = vmul.f32 1.0, %v258
    %v260 = vmul.f32 %v251, %v259
    %v261 = vadd.f32 %v260, %v60
    %262 = vst [vmem:[#allocation8] sm:$0xff] %v261
    // Predicated region
    $region34: #{tpu_custom_call.1} parent=1 // pred_check
      _
    $region35: #{tpu_custom_call.1} parent=1 // pred_check_branch
      %264 = sbr.rel (0) target = $region37
    $region36: #{tpu_custom_call.1} parent=1 // pred_region
      %s266 = ssub.s32 128, 128
      %267 = vsyncadd [#allocation4], %s266
      %s269 = sshll.u32 [#allocation8], 4
      %s270 = int_to_ptr.vmem [resolvable:$true] %s269
      %272 = dma.vmem_to_hbm [thread:$0]  %s270, 128, %s5, [#allocation4]
    $region37: #{tpu_custom_call.1} parent=1 // pred_fallthru
      _
    // Predicated region
    $region38: #{tpu_custom_call.1} parent=1 // pred_check
      _
    $region39: #{tpu_custom_call.1} parent=1 // pred_check_branch
      %274 = sbr.rel (0) target = $region41
    $region40: #{tpu_custom_call.1} parent=1 // pred_region
      %275 = dma.done [#allocation4], 128
    $region41: #{tpu_custom_call.1} parent=1 // pred_fallthru
      _
    %276 = vsyncpa [#allocation3], 1
    %277 = vsyncpa [#allocation6], 1
    %278 = vsyncpa [#allocation4], 1

</llo_original>
